<compile_context>
chip_gen: v6e
topology: v6e:2x2x1
jax: 0.10.0
libtpu: 0.0.40
codegen_flags: <defaults>
</compile_context>

<pallas_src>
import functools

import jax
import jax.numpy as jnp
from jax.experimental import pallas as pl
from jax.experimental.pallas import tpu as pltpu


def ffn_kernel(x_ref, w1_ref, b1_ref, w2_ref, b2_ref, gamma_ref, beta_ref,
               o_ref, xn_ref, acc_ref):
    """Grid = (row_tiles, hidden_chunks); hidden axis is a reduction ("arbitrary").

    The (tm, d_in) f32 accumulator lives in VMEM scratch; LayerNorm is computed
    once per row tile (k == 0) and cached as bf16 for the MXU.
    """
    k = pl.program_id(1)

    @pl.when(k == 0)
    def _init():
        x = x_ref[...].astype(jnp.float32)
        # LayerNorm (eps=1e-6) over the last dim, in f32.
        mean = jnp.mean(x, axis=-1, keepdims=True)
        var = jnp.mean(jnp.square(x - mean), axis=-1, keepdims=True)
        xn = (x - mean) * jax.lax.rsqrt(var + 1e-6)
        xn = xn * gamma_ref[...] + beta_ref[...]
        xn_ref[...] = xn.astype(jnp.bfloat16)          # cached MXU input
        # Accumulator starts with residual + output bias (each added exactly once).
        acc_ref[...] = x + b2_ref[...]

    # One d_hid chunk of w_2(relu(w_1(xn))): bf16 MXU inputs, f32 accumulation.
    h = jnp.dot(xn_ref[...], w1_ref[...],
                preferred_element_type=jnp.float32) + b1_ref[...]
    h = jnp.maximum(h, 0.0)
    acc_ref[...] += jnp.dot(h.astype(jnp.bfloat16), w2_ref[...],
                            preferred_element_type=jnp.float32)

    @pl.when(k == pl.num_programs(1) - 1)
    def _finalize():
        # dropout: inference-mode identity (p=0.1 only active in training)
        o_ref[...] = acc_ref[...].astype(o_ref.dtype)


@functools.partial(jax.jit, static_argnames=("tm", "tk"))
def position_wise_ffn(x, w1, b1, w2, b2, gamma, beta, *, tm=256, tk=512):
    """x: (B, S, d_in).  Returns same shape/dtype."""
    B, S, d_in = x.shape
    d_hid = w1.shape[1]
    N = B * S
    x2 = x.reshape(N, d_in)

    # MXU-aligned row tile (256 = multiple of both the 128-row v5e MXU and the
    # 256-row v6e/v7x MXU).  Clamp to the full row count for small problems so
    # BlockSpec constraints hold and (on v7x) both TensorCores still get work.
    tm_eff = N if N <= tm else tm
    # Chunk the hidden dim so the (tm, d_hid) intermediate + per-chunk weights
    # stay inside v7x's 64 MiB VMEM.  Fall back to a single chunk if tk does not
    # divide d_hid (avoids garbage in padded reduction chunks).
    tk_eff = d_hid if (d_hid <= tk or d_hid % tk != 0) else tk

    # bf16 weights for the MXU (halves weight VMEM/HBM traffic); biases and
    # LayerNorm params stay f32 (elementwise path stays f32 for v5e).
    w1b = w1.astype(jnp.bfloat16)
    w2b = w2.astype(jnp.bfloat16)
    b1_2 = b1.reshape(1, d_hid).astype(jnp.float32)
    b2_2 = b2.reshape(1, d_in).astype(jnp.float32)
    g_2 = gamma.reshape(1, d_in).astype(jnp.float32)
    be_2 = beta.reshape(1, d_in).astype(jnp.float32)

    grid = (pl.cdiv(N, tm_eff), pl.cdiv(d_hid, tk_eff))

    cost = pl.CostEstimate(
        flops=4 * N * d_in * d_hid,                      # two matmuls
        transcendentals=N,                               # one rsqrt per row
        bytes_accessed=2 * N * d_in * 4 + 2 * d_in * d_hid * 2,
    )

    # TODO(synk): if d_in < 128 in production, pad d_in to a multiple of 128 (or
    # fold part of S into the last dim) so loads/stores are lane-dense instead of
    # masked vst.msk partial stores.
    out = pl.pallas_call(
        ffn_kernel,
        out_shape=jax.ShapeDtypeStruct((N, d_in), x.dtype),
        grid_spec=pltpu.PrefetchScalarGridSpec(
            num_scalar_prefetch=0,
            grid=grid,
            in_specs=[
                pl.BlockSpec((tm_eff, d_in), lambda i, k: (i, 0)),   # x rows
                pl.BlockSpec((d_in, tk_eff), lambda i, k: (0, k)),   # w1 chunk
                pl.BlockSpec((1, tk_eff), lambda i, k: (0, k)),      # b1 chunk
                pl.BlockSpec((tk_eff, d_in), lambda i, k: (k, 0)),   # w2 chunk
                pl.BlockSpec((1, d_in), lambda i, k: (0, 0)),        # b2
                pl.BlockSpec((1, d_in), lambda i, k: (0, 0)),        # gamma
                pl.BlockSpec((1, d_in), lambda i, k: (0, 0)),        # beta
            ],
            out_specs=pl.BlockSpec((tm_eff, d_in), lambda i, k: (i, 0)),
            scratch_shapes=[
                pltpu.VMEM((tm_eff, d_in), jnp.bfloat16),   # cached LayerNorm out
                pltpu.VMEM((tm_eff, d_in), jnp.float32),    # f32 accumulator
            ],
        ),
        compiler_params=pltpu.CompilerParams(
            dimension_semantics=("parallel", "arbitrary"),
            vmem_limit_bytes=64 * 1024 * 1024,
        ),
        input_output_aliases={0: 0},      # write the result in place of x2
        cost_estimate=cost,
    )(x2, w1b, b1_2, w2b, b2_2, g_2, be_2)
    return out.reshape(B, S, d_in)


def reference_bf16_mxu(x, w1, b1, w2, b2, gamma, beta):
    """Mirrors the kernel's numerics (f32 LN/elementwise, bf16 MXU, f32 accum)."""
    xf = x.astype(jnp.float32)
    mean = jnp.mean(xf, axis=-1, keepdims=True)
    var = jnp.mean(jnp.square(xf - mean), axis=-1, keepdims=True)
    xn = (xf - mean) * jax.lax.rsqrt(var + 1e-6) * gamma + beta
    h = jnp.dot(xn.astype(jnp.bfloat16), w1.astype(jnp.bfloat16),
                preferred_element_type=jnp.float32) + b1
    h = jnp.maximum(h, 0.0)
    y = jnp.dot(h.astype(jnp.bfloat16), w2.astype(jnp.bfloat16),
                preferred_element_type=jnp.float32) + b2
    return (y + xf).astype(x.dtype)


def reference_f32(x, w1, b1, w2, b2, gamma, beta):
    """Pure f32 reference matching the PyTorch module."""
    xf = x.astype(jnp.float32)
    mean = jnp.mean(xf, axis=-1, keepdims=True)
    var = jnp.mean(jnp.square(xf - mean), axis=-1, keepdims=True)
    xn = (xf - mean) / jnp.sqrt(var + 1e-6) * gamma + beta
    h = jnp.maximum(xn @ w1 + b1, 0.0)
    y = h @ w2 + b2
    return (y + xf).astype(x.dtype)


if __name__ == "__main__":
    key = jax.random.PRNGKey(0)
    B, S, d_in, d_hid = 2, 8, 32, 64

    k = jax.random.split(key, 8)
    x = jax.random.normal(k[0], (B, S, d_in), dtype=jnp.float32)
    # Deterministic "PyTorch-like" init (uniform +/- 1/sqrt(fan_in))
    w1 = jax.random.uniform(k[1], (d_in, d_hid), minval=-1.0, maxval=1.0) / jnp.sqrt(d_in)
    b1 = jax.random.uniform(k[2], (d_hid,), minval=-1.0, maxval=1.0) / jnp.sqrt(d_in)
    w2 = jax.random.uniform(k[3], (d_hid, d_in), minval=-1.0, maxval=1.0) / jnp.sqrt(d_hid)
    b2 = jax.random.uniform(k[4], (d_in,), minval=-1.0, maxval=1.0) / jnp.sqrt(d_hid)
    gamma = jnp.ones((d_in,), jnp.float32)
    beta = jnp.zeros((d_in,), jnp.float32)

    out = position_wise_ffn(x, w1, b1, w2, b2, gamma, beta)
    out = jax.block_until_ready(out)

    assert out.shape == x.shape and out.dtype == x.dtype
    # Tight check against a reference that mirrors the kernel's bf16-MXU numerics.
    ref_mxu = reference_bf16_mxu(x, w1, b1, w2, b2, gamma, beta)
    assert jnp.allclose(out, ref_mxu, atol=1e-4, rtol=1e-4)
    # Looser sanity check against the full-f32 PyTorch-equivalent forward.
    ref32 = reference_f32(x, w1, b1, w2, b2, gamma, beta)
    assert jnp.allclose(out, ref32, atol=5e-2, rtol=5e-2)
    print("KERNEL_OK")
</pallas_src>

<mosaic_0001>
module attributes {stable_mosaic.version = 11 : i64} {
  func.func @ffn_kernel(%arg0: i32, %arg1: i32, %arg2: memref<16x32xf32, #tpu.memory_space<vmem>>, %arg3: memref<32x64xbf16, #tpu.memory_space<vmem>>, %arg4: memref<1x64xf32, #tpu.memory_space<vmem>>, %arg5: memref<64x32xbf16, #tpu.memory_space<vmem>>, %arg6: memref<1x32xf32, #tpu.memory_space<vmem>>, %arg7: memref<1x32xf32, #tpu.memory_space<vmem>>, %arg8: memref<1x32xf32, #tpu.memory_space<vmem>>, %arg9: memref<16x32xf32, #tpu.memory_space<vmem>>, %arg10: memref<16x32xbf16, #tpu.memory_space<vmem>>, %arg11: memref<16x32xf32, #tpu.memory_space<vmem>>) attributes {dimension_semantics = [#tpu.dimension_semantics<parallel>, #tpu.dimension_semantics<arbitrary>], iteration_bounds = array<i64: 1, 1>, scalar_prefetch = 0 : i64, scratch_operands = 2 : i64, tpu.core_type = #tpu.core_type<tc>, window_params = [{transform_indices = @transform_0, window_bounds = array<i64: 16, 32>}, {transform_indices = @transform_1, window_bounds = array<i64: 32, 64>}, {transform_indices = @transform_2, window_bounds = array<i64: 1, 64>}, {transform_indices = @transform_3, window_bounds = array<i64: 64, 32>}, {pipeline_mode = #tpu.pipeline_mode<synchronous>, transform_indices = @transform_4, window_bounds = array<i64: 1, 32>}, {pipeline_mode = #tpu.pipeline_mode<synchronous>, transform_indices = @transform_5, window_bounds = array<i64: 1, 32>}, {pipeline_mode = #tpu.pipeline_mode<synchronous>, transform_indices = @transform_6, window_bounds = array<i64: 1, 32>}, {transform_indices = @transform_7, window_bounds = array<i64: 16, 32>}]} {
    %c0_i32 = arith.constant 0 : i32
    %0 = arith.cmpi eq, %arg1, %c0_i32 : i32
    %1 = arith.extui %0 : i1 to i32
    %c0_i32_0 = arith.constant 0 : i32
    %2 = arith.cmpi ne, %1, %c0_i32_0 : i32
    scf.if %2 {
      %c0_16 = arith.constant 0 : index
      %c0_17 = arith.constant 0 : index
      %20 = vector.load %arg2[%c0_16, %c0_17] : memref<16x32xf32, #tpu.memory_space<vmem>>, vector<16x32xf32>
      %cst_18 = arith.constant dense<0.000000e+00> : vector<16xf32>
      %21 = vector.multi_reduction <add>, %20, %cst_18 [1] : vector<16x32xf32> to vector<16xf32>
      %22 = vector.shape_cast %21 : vector<16xf32> to vector<16x1xf32>
      %cst_19 = arith.constant 3.200000e+01 : f32
      %23 = vector.broadcast %cst_19 : f32 to vector<16x1xf32>
      %24 = arith.divf %22, %23 : vector<16x1xf32>
      %25 = vector.broadcast %24 : vector<16x1xf32> to vector<16x32xf32>
      %26 = arith.subf %20, %25 : vector<16x32xf32>
      %27 = arith.mulf %26, %26 : vector<16x32xf32>
      %cst_20 = arith.constant dense<0.000000e+00> : vector<16xf32>
      %28 = vector.multi_reduction <add>, %27, %cst_20 [1] : vector<16x32xf32> to vector<16xf32>
      %29 = vector.shape_cast %28 : vector<16xf32> to vector<16x1xf32>
      %cst_21 = arith.constant 3.200000e+01 : f32
      %30 = vector.broadcast %cst_21 : f32 to vector<16x1xf32>
      %31 = arith.divf %29, %30 : vector<16x1xf32>
      %32 = vector.broadcast %24 : vector<16x1xf32> to vector<16x32xf32>
      %33 = arith.subf %20, %32 : vector<16x32xf32>
      %cst_22 = arith.constant 9.99999997E-7 : f32
      %34 = vector.broadcast %cst_22 : f32 to vector<16x1xf32>
      %35 = arith.addf %31, %34 : vector<16x1xf32>
      %36 = math.rsqrt %35 : vector<16x1xf32>
      %37 = vector.broadcast %36 : vector<16x1xf32> to vector<16x32xf32>
      %38 = arith.mulf %33, %37 : vector<16x32xf32>
      %c0_23 = arith.constant 0 : index
      %c0_24 = arith.constant 0 : index
      %39 = vector.load %arg7[%c0_23, %c0_24] : memref<1x32xf32, #tpu.memory_space<vmem>>, vector<1x32xf32>
      %40 = vector.broadcast %39 : vector<1x32xf32> to vector<16x32xf32>
      %41 = arith.mulf %38, %40 : vector<16x32xf32>
      %c0_25 = arith.constant 0 : index
      %c0_26 = arith.constant 0 : index
      %42 = vector.load %arg8[%c0_25, %c0_26] : memref<1x32xf32, #tpu.memory_space<vmem>>, vector<1x32xf32>
      %43 = vector.broadcast %42 : vector<1x32xf32> to vector<16x32xf32>
      %44 = arith.addf %41, %43 : vector<16x32xf32>
      %45 = arith.truncf %44 : vector<16x32xf32> to vector<16x32xbf16>
      %c0_27 = arith.constant 0 : index
      %c0_28 = arith.constant 0 : index
      %46 = vector.load %arg10[%c0_27, %c0_28] : memref<16x32xbf16, #tpu.memory_space<vmem>>, vector<16x32xbf16>
      tpu.vector_store %arg10[%c0_27, %c0_28], %45 {strides = array<i32>} : memref<16x32xbf16, #tpu.memory_space<vmem>>, vector<16x32xbf16>,
      %c0_29 = arith.constant 0 : index
      %c0_30 = arith.constant 0 : index
      %47 = vector.load %arg6[%c0_29, %c0_30] : memref<1x32xf32, #tpu.memory_space<vmem>>, vector<1x32xf32>
      %48 = vector.broadcast %47 : vector<1x32xf32> to vector<16x32xf32>
      %49 = arith.addf %20, %48 : vector<16x32xf32>
      %c0_31 = arith.constant 0 : index
      %c0_32 = arith.constant 0 : index
      %50 = vector.load %arg11[%c0_31, %c0_32] : memref<16x32xf32, #tpu.memory_space<vmem>>, vector<16x32xf32>
      tpu.vector_store %arg11[%c0_31, %c0_32], %49 {strides = array<i32>} : memref<16x32xf32, #tpu.memory_space<vmem>>, vector<16x32xf32>,
    } else {
    }
    %c0 = arith.constant 0 : index
    %c0_1 = arith.constant 0 : index
    %3 = vector.load %arg10[%c0, %c0_1] : memref<16x32xbf16, #tpu.memory_space<vmem>>, vector<16x32xbf16>
    %c0_2 = arith.constant 0 : index
    %c0_3 = arith.constant 0 : index
    %4 = vector.load %arg3[%c0_2, %c0_3] : memref<32x64xbf16, #tpu.memory_space<vmem>>, vector<32x64xbf16>
    %cst = arith.constant dense<0.000000e+00> : vector<16x64xf32>
    %5 = tpu.matmul %3, %4, %cst {dimension_numbers = #tpu.dot_dimension_numbers<[1], [0], [0], [1], [0, 0, 1, 1], [], []>} : vector<16x32xbf16>, vector<32x64xbf16>, vector<16x64xf32> -> vector<16x64xf32>
    %c0_4 = arith.constant 0 : index
    %c0_5 = arith.constant 0 : index
    %6 = vector.load %arg4[%c0_4, %c0_5] : memref<1x64xf32, #tpu.memory_space<vmem>>, vector<1x64xf32>
    %7 = vector.broadcast %6 : vector<1x64xf32> to vector<16x64xf32>
    %8 = arith.addf %5, %7 : vector<16x64xf32>
    %cst_6 = arith.constant 0.000000e+00 : f32
    %9 = vector.broadcast %cst_6 : f32 to vector<16x64xf32>
    %10 = arith.maximumf %8, %9 : vector<16x64xf32>
    %c0_7 = arith.constant 0 : index
    %c0_8 = arith.constant 0 : index
    %11 = vector.load %arg11[%c0_7, %c0_8] : memref<16x32xf32, #tpu.memory_space<vmem>>, vector<16x32xf32>
    %12 = arith.truncf %10 : vector<16x64xf32> to vector<16x64xbf16>
    %c0_9 = arith.constant 0 : index
    %c0_10 = arith.constant 0 : index
    %13 = vector.load %arg5[%c0_9, %c0_10] : memref<64x32xbf16, #tpu.memory_space<vmem>>, vector<64x32xbf16>
    %cst_11 = arith.constant dense<0.000000e+00> : vector<16x32xf32>
    %14 = tpu.matmul %12, %13, %cst_11 {dimension_numbers = #tpu.dot_dimension_numbers<[1], [0], [0], [1], [0, 0, 1, 1], [], []>} : vector<16x64xbf16>, vector<64x32xbf16>, vector<16x32xf32> -> vector<16x32xf32>
    %15 = arith.addf %11, %14 : vector<16x32xf32>
    %c0_12 = arith.constant 0 : index
    %c0_13 = arith.constant 0 : index
    %16 = vector.load %arg11[%c0_12, %c0_13] : memref<16x32xf32, #tpu.memory_space<vmem>>, vector<16x32xf32>
    tpu.vector_store %arg11[%c0_12, %c0_13], %15 {strides = array<i32>} : memref<16x32xf32, #tpu.memory_space<vmem>>, vector<16x32xf32>,
    %c0_i32_14 = arith.constant 0 : i32
    %17 = arith.cmpi eq, %arg1, %c0_i32_14 : i32
    %18 = arith.extui %17 : i1 to i32
    %c0_i32_15 = arith.constant 0 : i32
    %19 = arith.cmpi ne, %18, %c0_i32_15 : i32
    scf.if %19 {
      %c0_16 = arith.constant 0 : index
      %c0_17 = arith.constant 0 : index
      %20 = vector.load %arg11[%c0_16, %c0_17] : memref<16x32xf32, #tpu.memory_space<vmem>>, vector<16x32xf32>
      %c0_18 = arith.constant 0 : index
      %c0_19 = arith.constant 0 : index
      %21 = vector.load %arg9[%c0_18, %c0_19] : memref<16x32xf32, #tpu.memory_space<vmem>>, vector<16x32xf32>
      tpu.vector_store %arg9[%c0_18, %c0_19], %20 {strides = array<i32>} : memref<16x32xf32, #tpu.memory_space<vmem>>, vector<16x32xf32>,
    } else {
    }
    return
  }
  func.func @transform_0(%arg0: i32, %arg1: i32) -> (i32, i32) {
    %c0_i32 = arith.constant 0 : i32
    %c0_i32_0 = arith.constant 0 : i32
    return %arg0, %c0_i32 : i32, i32
  }
  func.func @transform_1(%arg0: i32, %arg1: i32) -> (i32, i32) {
    %c0_i32 = arith.constant 0 : i32
    %c0_i32_0 = arith.constant 0 : i32
    return %c0_i32, %arg1 : i32, i32
  }
  func.func @transform_2(%arg0: i32, %arg1: i32) -> (i32, i32) {
    %c0_i32 = arith.constant 0 : i32
    %c0_i32_0 = arith.constant 0 : i32
    return %c0_i32, %arg1 : i32, i32
  }
  func.func @transform_3(%arg0: i32, %arg1: i32) -> (i32, i32) {
    %c0_i32 = arith.constant 0 : i32
    %c0_i32_0 = arith.constant 0 : i32
    return %arg1, %c0_i32 : i32, i32
  }
  func.func @transform_4(%arg0: i32, %arg1: i32) -> (i32, i32) {
    %c0_i32 = arith.constant 0 : i32
    %c0_i32_0 = arith.constant 0 : i32
    %c0_i32_1 = arith.constant 0 : i32
    return %c0_i32, %c0_i32_0 : i32, i32
  }
  func.func @transform_5(%arg0: i32, %arg1: i32) -> (i32, i32) {
    %c0_i32 = arith.constant 0 : i32
    %c0_i32_0 = arith.constant 0 : i32
    %c0_i32_1 = arith.constant 0 : i32
    return %c0_i32, %c0_i32_0 : i32, i32
  }
  func.func @transform_6(%arg0: i32, %arg1: i32) -> (i32, i32) {
    %c0_i32 = arith.constant 0 : i32
    %c0_i32_0 = arith.constant 0 : i32
    %c0_i32_1 = arith.constant 0 : i32
    return %c0_i32, %c0_i32_0 : i32, i32
  }
  func.func @transform_7(%arg0: i32, %arg1: i32) -> (i32, i32) {
    %c0_i32 = arith.constant 0 : i32
    %c0_i32_0 = arith.constant 0 : i32
    return %arg0, %c0_i32 : i32, i32
  }
}

</mosaic_0001>

<llo_original>
// kernel: position_wise_ffn.1
$region0: #{position_wise_ffn.1}
  #allocation0 [shape = 'u32[]', space=smem, size = 0x4, offset = 0x4, fixed_abs, tag = 'smem constant byte address 0x4 - core index']
  #allocation1 [shape = 'u32[144,128]{1,0:T(1,128)}', space=vmem, size = 0x12000, scoped, tag = 'internal scratch']
  #allocation2 [shape = 'bf16[16,32]{1,0:T(8,128)(2,1)}', space=vmem, size = 0x1000, scoped, tag = 'scratch operand']
  #allocation3 [shape = 'f32[16,32]{1,0:T(8,128)}', space=vmem, size = 0x2000, scoped, tag = 'scratch operand']
  %s0 = inlined_call_operand.vmem [shape: f32[16,32], index: 0, kind: input, shape index: {}, may-alias: {0,7}]
  %s1 = inlined_call_operand.vmem [shape: bf16[32,64], index: 1, kind: input, shape index: {}]
  %s2 = inlined_call_operand.vmem [shape: f32[1,64], index: 2, kind: input, shape index: {}]
  %s3 = inlined_call_operand.vmem [shape: bf16[64,32], index: 3, kind: input, shape index: {}]
  %s4 = inlined_call_operand.vmem [shape: f32[1,32], index: 4, kind: input, shape index: {}]
  %s5 = inlined_call_operand.vmem [shape: f32[1,32], index: 5, kind: input, shape index: {}]
  %s6 = inlined_call_operand.vmem [shape: f32[1,32], index: 6, kind: input, shape index: {}]
  %s7 = inlined_call_operand.vmem [shape: f32[16,32], index: 7, kind: output, shape index: {}, may-alias: {0,7}]
  %s8 = sld [smem:[#allocation0]]
  $region46: #{position_wise_ffn.1} parent=0
    _
  %s10 = ssub.s32 1, %s8
  %s11 = scalar_select 0, %s10, %s8
  // Predicated region
  $region2: #{position_wise_ffn.1} parent=0 // pred_check
    _
  $region3: #{position_wise_ffn.1} parent=0 // pred_check_branch
    %13 = sbr.rel (0) target = $region5
  $region4: #{position_wise_ffn.1} parent=0 // pred_region
    _
  $region5: #{position_wise_ffn.1} parent=0 // pred_fallthru
    _
  // Predicated region
  $region6: #{position_wise_ffn.1} parent=0 // pred_check
    _
  $region7: #{position_wise_ffn.1} parent=0 // pred_check_branch
    %15 = sbr.rel (0) target = $region9
  $region8: #{position_wise_ffn.1} parent=0 // pred_region
    _
  $region9: #{position_wise_ffn.1} parent=0 // pred_fallthru
    _
  // Predicated region
  $region10: #{position_wise_ffn.1} parent=0 // pred_check
    _
  $region11: #{position_wise_ffn.1} parent=0 // pred_check_branch
    %17 = sbr.rel (0) target = $region13
  $region12: #{position_wise_ffn.1} parent=0 // pred_region
    _
  $region13: #{position_wise_ffn.1} parent=0 // pred_fallthru
    _
  // Predicated region
  $region14: #{position_wise_ffn.1} parent=0 // pred_check
    _
  $region15: #{position_wise_ffn.1} parent=0 // pred_check_branch
    %19 = sbr.rel (0) target = $region17
  $region16: #{position_wise_ffn.1} parent=0 // pred_region
    _
  $region17: #{position_wise_ffn.1} parent=0 // pred_fallthru
    _
  // Predicated region
  $region18: #{position_wise_ffn.1} parent=0 // pred_check
    _
  $region19: #{position_wise_ffn.1} parent=0 // pred_check_branch
    %21 = sbr.rel (0) target = $region21
  $region20: #{position_wise_ffn.1} parent=0 // pred_region
    _
  $region21: #{position_wise_ffn.1} parent=0 // pred_fallthru
    _
  // Predicated region
  $region22: #{position_wise_ffn.1} parent=0 // pred_check
    _
  $region23: #{position_wise_ffn.1} parent=0 // pred_check_branch
    %23 = sbr.rel (0) target = $region25
  $region24: #{position_wise_ffn.1} parent=0 // pred_region
    _
  $region25: #{position_wise_ffn.1} parent=0 // pred_fallthru
    _
  // Predicated region
  $region26: #{position_wise_ffn.1} parent=0 // pred_check
    _
  $region27: #{position_wise_ffn.1} parent=0 // pred_check_branch
    %25 = sbr.rel (0) target = $region29
  $region28: #{position_wise_ffn.1} parent=0 // pred_region
    _
  $region29: #{position_wise_ffn.1} parent=0 // pred_fallthru
    _
  %p27 = scmp.eq.s32.totalorder 0, 0
  // Predicated region
  $region30: #{position_wise_ffn.1} parent=0 // pred_check
    %p28 = pneg %p27
  $region31: #{position_wise_ffn.1} parent=0 // pred_check_branch
    %30 = sbr.rel (%p28) target = $region33
  $region32: #{position_wise_ffn.1} parent=0 // pred_region
    %v31 = vld [vmem:[%s0] sm:$0xff]
    %v32 = vld [vmem:[%s0 + $0x8] sm:$0xff]
    %vm33 = vcmask 261120
    %v34 = vsel %vm33, %v31, 0.0
    %35 = vadd.xlane.f32.xlu0 %v34
    %v36 = vpop.xlane.xlu0 %35
    %v37 = vsel %vm33, %v32, 0.0
    %38 = vadd.xlane.f32.xlu0 %v37
    %v39 = vpop.xlane.xlu0 %38
    %v40 = vrcp.pop 32.0
    %v41 = vmul.f32 %v36, %v40
    %v42 = vmul.f32 %v39, %v40
    %v43 = vsub.f32 %v31, %v41
    %v44 = vsub.f32 %v32, %v42
    %v45 = vmul.f32 %v43, %v43
    %v46 = vmul.f32 %v44, %v44
    %v47 = vsel %vm33, %v45, 0.0
    %48 = vadd.xlane.f32.xlu0 %v47
    %v49 = vpop.xlane.xlu0 %48
    %v50 = vsel %vm33, %v46, 0.0
    %51 = vadd.xlane.f32.xlu0 %v50
    %v52 = vpop.xlane.xlu0 %51
    %v53 = vmul.f32 %v49, %v40
    %v54 = vmul.f32 %v52, %v40
    %v55 = vadd.f32 %v53, 1e-06
    %v56 = vadd.f32 %v54, 1e-06
    %v57 = vrsqrt.pop %v55
    %v58 = vrsqrt.pop %v56
    %v59 = vmul.f32 %v43, %v57
    %v60 = vmul.f32 %v44, %v58
    %v61 = vld [vmem:[%s5] sm:$0x1]
    %v63 = vlaneseq
    %v64 = vshrl.u32 %v63, 7
    %v65 = vsub.s32 0, %v64
    %v66 = vrot.slane %v61, %v65
    %v68 = vmul.f32 %v59, %v66
    %v69 = vmul.f32 %v60, %v66
    %v70 = vld [vmem:[%s6] sm:$0x1]
    %v72 = vlaneseq
    %v73 = vshrl.u32 %v72, 7
    %v74 = vsub.s32 0, %v73
    %v75 = vrot.slane %v70, %v74
    %v77 = vadd.f32 %v68, %v75
    %v78 = vadd.f32 %v69, %v75
    %v79 = vpack.c.bf16 %v78, %v77
    %v81 = vunpack.c.l.b16 %v79
    %v82 = vunpack.c.h.b16 %v79
    %v83 = vpack.c.b16 %v81, %v81
    %v84 = vpack.c.b16 %v82, %v82
    %vm87 = vcmask 257024
    %88 = vst.msk [vmem:[#allocation2] sm:$0xf] %vm87, %v83
    %89 = vst.msk [vmem:[#allocation2 + $0x4] sm:$0xf] %vm87, %v84
    %v90 = vld [vmem:[%s4] sm:$0x1]
    %v92 = vlaneseq
    %v93 = vshrl.u32 %v92, 7
    %v94 = vsub.s32 0, %v93
    %v95 = vrot.slane %v90, %v94
    %v97 = vadd.f32 %v31, %v95
    %v98 = vadd.f32 %v32, %v95
    %99 = vst.msk [vmem:[#allocation3] sm:$0xff] %vm33, %v97
    %100 = vst.msk [vmem:[#allocation3 + $0x8] sm:$0xff] %vm33, %v98
  $region33: #{position_wise_ffn.1} parent=0 // pred_fallthru
    _
  %v101 = vld [vmem:[#allocation2] sm:$0xf]
  %v102 = vld [vmem:[#allocation2 + $0x4] sm:$0xf]
  %v103 = vld [vmem:[%s1] sm:$0xf]
  %v104 = vld [vmem:[%s1 + $0x4] sm:$0xf]
  %v105 = vld [vmem:[%s1 + $0x8] sm:$0xf]
  %v106 = vld [vmem:[%s1 + $0xc] sm:$0xf]
  %v107 = vld [vmem:[%s2] sm:$0x1]
  %v109 = vlaneseq
  %v110 = vshrl.u32 %v109, 7
  %v111 = vsub.s32 0, %v110
  %v112 = vrot.slane %v107, %v111
  %v116 = vunpack.c.l.b16 %v101
  %v117 = vunpack.c.l.b16 %v102
  %v118 = vpack.c.b16 %v117, %v116
  %v123 = vunpack.c.l.b16 %v103
  %v124 = vunpack.c.l.b16 %v104
  %v125 = vunpack.c.l.b16 %v105
  %v126 = vunpack.c.l.b16 %v106
  %v127 = vpack.c.b16 %v124, %v123
  %v128 = vpack.c.b16 %v126, %v125
  %vm131 = vcmask 261120
  %v133 = vsel %vm131, %v118, 0
  %135 = vmatprep.subr.bf16.mxu0 0
  %136 = vmatpush1.bf16.msra.mxu0 0
  %137 = vmatprep.subr.bf16.mxu0 0
  %138 = vmatpush1.bf16.msra.mxu0 0
  %139 = vmatprep.subr.bf16.mxu0 0
  %140 = vmatpush1.bf16.msra.mxu0 0
  %141 = vmatprep.subr.bf16.mxu0 0
  %142 = vmatpush1.bf16.msra.mxu0 0
  %143 = vmatprep.subr.bf16.mxu0 0
  %144 = vmatpush1.bf16.msra.mxu0 0
  %145 = vmatprep.subr.bf16.mxu0 0
  %146 = vmatpush1.bf16.msra.mxu0 0
  %147 = vmatprep.subr.bf16.mxu0 0
  %148 = vmatpush1.bf16.msra.mxu0 %v128
  %149 = vmatprep.subr.bf16.mxu0 0
  %150 = vmatpush1.bf16.msra.mxu0 %v127
  %151 = vmatprep.subr.bf16.mxu0 0
  %152 = vmatpush2.bf16.msra.mxu0 0
  %153 = vmatprep.subr.bf16.mxu0 0
  %154 = vmatpush2.bf16.msra.mxu0 0
  %155 = vmatprep.subr.bf16.mxu0 0
  %156 = vmatpush2.bf16.msra.mxu0 0
  %157 = vmatprep.subr.bf16.mxu0 0
  %158 = vmatpush2.bf16.msra.mxu0 0
  %159 = vmatprep.subr.bf16.mxu0 0
  %160 = vmatpush2.bf16.msra.mxu0 0
  %161 = vmatprep.subr.bf16.mxu0 0
  %162 = vmatpush2.bf16.msra.mxu0 0
  %163 = vmatprep.subr.bf16.mxu0 0
  %164 = vmatpush2.bf16.msra.mxu0 0
  %165 = vmatprep.subr.bf16.mxu0 0
  %166 = vmatpush2.bf16.msra.mxu0 0
  %167 = vmatprep.mubr.bf16.mxu0 0
  %168 = vmatmul.mubr.bf16.gmra.mxu0 %v133
  %v169 = vpop.f32.mrf.mxu0
  %v170 = vadd.f32 %v112, %v169
  %v171 = vpop.f32.mrf.mxu0
  %v172 = vpop.f32.mrf.mxu0
  %v173 = vadd.f32 %v112, %v172
  %v174 = vpop.f32.mrf.mxu0
  %175 = vdwg.mxu0
  %v176 = vmax.f32 %v170, 0.0
  %v177 = vmax.f32 %v173, 0.0
  %v178 = vld [vmem:[#allocation3] sm:$0xff]
  %v179 = vld [vmem:[#allocation3 + $0x8] sm:$0xff]
  %v180 = vpack.c.bf16 %v177, %v176
  %v181 = vld [vmem:[%s3] sm:$0xf]
  %v182 = vld [vmem:[%s3 + $0x4] sm:$0xf]
  %v183 = vld [vmem:[%s3 + $0x8] sm:$0xf]
  %v184 = vld [vmem:[%s3 + $0xc] sm:$0xf]
  %v185 = vld [vmem:[%s3 + $0x10] sm:$0xf]
  %v186 = vld [vmem:[%s3 + $0x14] sm:$0xf]
  %v187 = vld [vmem:[%s3 + $0x18] sm:$0xf]
  %v188 = vld [vmem:[%s3 + $0x1c] sm:$0xf]
  %v197 = vunpack.c.l.b16 %v181
  %v198 = vunpack.c.l.b16 %v182
  %v199 = vunpack.c.l.b16 %v183
  %v200 = vunpack.c.l.b16 %v184
  %v201 = vunpack.c.l.b16 %v185
  %v202 = vunpack.c.l.b16 %v186
  %v203 = vunpack.c.l.b16 %v187
  %v204 = vunpack.c.l.b16 %v188
  %v205 = vpack.c.b16 %v198, %v197
  %v206 = vpack.c.b16 %v200, %v199
  %v207 = vpack.c.b16 %v202, %v201
  %v208 = vpack.c.b16 %v204, %v203
  %vm213 = vcmask 523264
  %v215 = vsel %vm213, %v180, 0
  %217 = vmatprep.subr.bf16.mxu0 0
  %218 = vmatpush1.bf16.msra.mxu0 0
  %219 = vmatprep.subr.bf16.mxu0 0
  %220 = vmatpush1.bf16.msra.mxu0 0
  %221 = vmatprep.subr.bf16.mxu0 0
  %222 = vmatpush1.bf16.msra.mxu0 0
  %223 = vmatprep.subr.bf16.mxu0 0
  %224 = vmatpush1.bf16.msra.mxu0 0
  %225 = vmatprep.subr.bf16.mxu0 0
  %226 = vmatpush1.bf16.msra.mxu0 %v208
  %227 = vmatprep.subr.bf16.mxu0 0
  %228 = vmatpush1.bf16.msra.mxu0 %v207
  %229 = vmatprep.subr.bf16.mxu0 0
  %230 = vmatpush1.bf16.msra.mxu0 %v206
  %231 = vmatprep.subr.bf16.mxu0 0
  %232 = vmatpush1.bf16.msra.mxu0 %v205
  %233 = vmatprep.subr.bf16.mxu0 0
  %234 = vmatpush2.bf16.msra.mxu0 0
  %235 = vmatprep.subr.bf16.mxu0 0
  %236 = vmatpush2.bf16.msra.mxu0 0
  %237 = vmatprep.subr.bf16.mxu0 0
  %238 = vmatpush2.bf16.msra.mxu0 0
  %239 = vmatprep.subr.bf16.mxu0 0
  %240 = vmatpush2.bf16.msra.mxu0 0
  %241 = vmatprep.subr.bf16.mxu0 0
  %242 = vmatpush2.bf16.msra.mxu0 0
  %243 = vmatprep.subr.bf16.mxu0 0
  %244 = vmatpush2.bf16.msra.mxu0 0
  %245 = vmatprep.subr.bf16.mxu0 0
  %246 = vmatpush2.bf16.msra.mxu0 0
  %247 = vmatprep.subr.bf16.mxu0 0
  %248 = vmatpush2.bf16.msra.mxu0 0
  %249 = vmatprep.mubr.bf16.mxu0 0
  %250 = vmatmul.mubr.bf16.gmra.mxu0 %v215
  %v251 = vpop.f32.mrf.mxu0
  %v252 = vadd.f32 0.0, %v251
  %v253 = vpop.f32.mrf.mxu0
  %v254 = vpop.f32.mrf.mxu0
  %v255 = vadd.f32 0.0, %v254
  %v256 = vpop.f32.mrf.mxu0
  %257 = vdwg.mxu0
  %v258 = vadd.f32 %v178, %v252
  %v259 = vadd.f32 %v179, %v255
  %260 = vst.msk [vmem:[#allocation3] sm:$0xff] %vm131, %v258
  %261 = vst.msk [vmem:[#allocation3 + $0x8] sm:$0xff] %vm131, %v259
  // Predicated region
  $region34: #{position_wise_ffn.1} parent=0 // pred_check
    %p262 = pneg %p27
  $region35: #{position_wise_ffn.1} parent=0 // pred_check_branch
    %264 = sbr.rel (%p262) target = $region37
  $region36: #{position_wise_ffn.1} parent=0 // pred_region
    %v265 = vld [vmem:[#allocation3] sm:$0xff]
    %v266 = vld [vmem:[#allocation3 + $0x8] sm:$0xff]
    %267 = vst.msk [vmem:[%s7] sm:$0xff] %vm131, %v265
    %268 = vst.msk [vmem:[%s7 + $0x8] sm:$0xff] %vm131, %v266
  $region37: #{position_wise_ffn.1} parent=0 // pred_fallthru
    _
  // Predicated region
  $region38: #{position_wise_ffn.1} parent=0 // pred_check
    _
  $region39: #{position_wise_ffn.1} parent=0 // pred_check_branch
    %270 = sbr.rel (0) target = $region41
  $region40: #{position_wise_ffn.1} parent=0 // pred_region
    _
  $region41: #{position_wise_ffn.1} parent=0 // pred_fallthru
    _
  // Predicated region
  $region42: #{position_wise_ffn.1} parent=0 // pred_check
    _
  $region43: #{position_wise_ffn.1} parent=0 // pred_check_branch
    %272 = sbr.rel (0) target = $region45
  $region44: #{position_wise_ffn.1} parent=0 // pred_region
    _
  $region45: #{position_wise_ffn.1} parent=0 // pred_fallthru
    _

</llo_original>
